<compile_context>
chip_gen: v5e
topology: v5e:2x2
jax: 0.10.0
libtpu: 0.0.40
codegen_flags: <defaults>
</compile_context>

<pallas_src>
import functools

import jax
import jax.numpy as jnp
from jax import lax
from jax.experimental import pallas as pl
from jax.experimental.pallas import tpu as pltpu

_LANES = 128


def _round_up(x, m):
    return ((x + m - 1) // m) * m


def _cdiv(a, b):
    return (a + b - 1) // b


def _masked_abs_sum_kernel(re_ref, im_ref, m_ref, out_ref, *,
                           rows_total, tile_rows, inner_tiles):
    p = pl.program_id(0)   # parallel chunk (sharded across TCs on v7x)
    i = pl.program_id(1)   # serial reduction axis

    @pl.when(i == 0)
    def _():
        out_ref[...] = jnp.zeros_like(out_ref)

    re = re_ref[...].astype(jnp.float32)
    im = im_ref[...].astype(jnp.float32)
    m = m_ref[...].astype(jnp.float32)

    # |(re + i*im) * m| for a real-valued mask m.
    rm = re * m
    im_m = im * m
    mag = jnp.sqrt(rm * rm + im_m * im_m)

    # Zero rows past the logical end of the data (uneven last tile and
    # grid-padding tiles).  `where` is a select, so any garbage (even NaN) in
    # the invalid rows is discarded exactly -- no sqrt(eps)*pad correction.
    tile_idx = p * inner_tiles + i
    rows_remaining = rows_total - tile_idx * tile_rows
    row_id = lax.broadcasted_iota(jnp.int32, mag.shape, 0)
    mag = jnp.where(row_id < rows_remaining, mag, 0.0)

    # Fold (tile_rows, 128) -> (8, 128) with sublane-aligned VPU adds; the
    # final cross-lane reduction of the small partials happens outside.
    out_ref[...] += mag.reshape(tile_rows // 8, 8, _LANES).sum(axis=0)


def fft_loss(x, y, mask, *, tile_rows=2048, parallel_chunks=2):
    """mean(|fft2(x) - fft2(y)| * mask); mask real-valued, broadcastable to x."""
    # TODO(synk): a complex-valued mask would need a complex multiply inside the
    # kernel; real masks (the usual frequency-weighting case) are assumed.
    diff = jnp.fft.fft2(x.astype(jnp.float32) - y.astype(jnp.float32))
    re = jnp.real(diff).reshape(-1)
    im = jnp.imag(diff).reshape(-1)
    m = jnp.broadcast_to(mask, diff.shape).astype(jnp.float32).reshape(-1)

    n = re.shape[0]
    n_main = (n // _LANES) * _LANES          # whole-lane prefix -> Pallas kernel
    total = jnp.float32(0.0)

    if n_main:
        rows = n_main // _LANES
        tr = max(8, min(_round_up(tile_rows, 8), _round_up(rows, 8)))
        nblocks = _cdiv(rows, tr)
        n_par = max(1, min(parallel_chunks, nblocks))
        inner = _cdiv(nblocks, n_par)

        re2 = re[:n_main].reshape(rows, _LANES)
        im2 = im[:n_main].reshape(rows, _LANES)
        m2 = m[:n_main].reshape(rows, _LANES)

        def in_map(p, i):
            # Clamp so grid-padding tiles (when n_par does not divide nblocks)
            # stay in bounds; their rows are fully masked in-kernel anyway.
            return (jnp.minimum(p * inner + i, nblocks - 1), 0)

        in_spec = pl.BlockSpec((tr, _LANES), in_map)
        kernel = functools.partial(_masked_abs_sum_kernel,
                                   rows_total=rows, tile_rows=tr,
                                   inner_tiles=inner)

        partials = pl.pallas_call(
            kernel,
            out_shape=jax.ShapeDtypeStruct((n_par * 8, _LANES), jnp.float32),
            grid_spec=pltpu.PrefetchScalarGridSpec(
                num_scalar_prefetch=0,
                grid=(n_par, inner),
                in_specs=[in_spec, in_spec, in_spec],
                out_specs=pl.BlockSpec((8, _LANES), lambda p, i: (p, 0)),
            ),
            compiler_params=pltpu.CompilerParams(
                dimension_semantics=("parallel", "arbitrary")),
            cost_estimate=pl.CostEstimate(
                flops=6 * n_main,
                transcendentals=n_main,
                bytes_accessed=12 * n_main + n_par * 8 * _LANES * 4),
        )(re2, im2, m2)

        total = total + jnp.sum(partials)

    if n_main < n:
        # Lane tail (< 128 elements): plain jnp, no full-array padding copies.
        rt, it, mt = re[n_main:], im[n_main:], m[n_main:]
        total = total + jnp.sum(jnp.sqrt((rt * mt) ** 2 + (it * mt) ** 2))

    return total / jnp.float32(n)


def fft_loss_ref(x, y, mask):
    diff = jnp.fft.fft2(x) - jnp.fft.fft2(y)
    return jnp.mean(jnp.abs(diff * mask))


if __name__ == "__main__":
    key = jax.random.PRNGKey(0)
    kx, ky, km = jax.random.split(key, 3)
    # NCHW = (2, 4, 16, 16), consistent with the image-restoration loss.
    x = jax.random.normal(kx, (2, 4, 16, 16), dtype=jnp.float32)
    y = jax.random.normal(ky, (2, 4, 16, 16), dtype=jnp.float32)
    mask = jax.random.uniform(km, (2, 4, 16, 16), dtype=jnp.float32)

    loss = fft_loss(x, y, mask)
    jax.block_until_ready(loss)

    ref = fft_loss_ref(x, y, mask)
    assert jnp.allclose(loss, ref, rtol=1e-4, atol=1e-4), (loss, ref)
    print("KERNEL_OK")
</pallas_src>

<mosaic_0001>
module attributes {stable_mosaic.version = 11 : i64} {
  func.func @_masked_abs_sum_kernel(%arg0: i32, %arg1: i32, %arg2: memref<16x128xf32, #tpu.memory_space<vmem>>, %arg3: memref<16x128xf32, #tpu.memory_space<vmem>>, %arg4: memref<16x128xf32, #tpu.memory_space<vmem>>, %arg5: memref<8x128xf32, #tpu.memory_space<vmem>>) attributes {dimension_semantics = [#tpu.dimension_semantics<parallel>, #tpu.dimension_semantics<arbitrary>], iteration_bounds = array<i64: 1, 1>, scalar_prefetch = 0 : i64, scratch_operands = 0 : i64, tpu.core_type = #tpu.core_type<tc>, window_params = [{transform_indices = @transform_0, window_bounds = array<i64: 16, 128>}, {transform_indices = @transform_1, window_bounds = array<i64: 16, 128>}, {transform_indices = @transform_2, window_bounds = array<i64: 16, 128>}, {transform_indices = @transform_3, window_bounds = array<i64: 8, 128>}]} {
    %c0_i32 = arith.constant 0 : i32
    %0 = arith.cmpi eq, %arg1, %c0_i32 : i32
    %1 = arith.extui %0 : i1 to i32
    %c0_i32_0 = arith.constant 0 : i32
    %2 = arith.cmpi ne, %1, %c0_i32_0 : i32
    scf.if %2 {
      %cst_12 = arith.constant 0.000000e+00 : f32
      %26 = vector.broadcast %cst_12 : f32 to vector<8x128xf32>
      %c0_13 = arith.constant 0 : index
      %c0_14 = arith.constant 0 : index
      %27 = vector.load %arg5[%c0_13, %c0_14] : memref<8x128xf32, #tpu.memory_space<vmem>>, vector<8x128xf32>
      tpu.vector_store %arg5[%c0_13, %c0_14], %26 {strides = array<i32>} : memref<8x128xf32, #tpu.memory_space<vmem>>, vector<8x128xf32>,
    } else {
    }
    %c0 = arith.constant 0 : index
    %c0_1 = arith.constant 0 : index
    %3 = vector.load %arg2[%c0, %c0_1] : memref<16x128xf32, #tpu.memory_space<vmem>>, vector<16x128xf32>
    %c0_2 = arith.constant 0 : index
    %c0_3 = arith.constant 0 : index
    %4 = vector.load %arg3[%c0_2, %c0_3] : memref<16x128xf32, #tpu.memory_space<vmem>>, vector<16x128xf32>
    %c0_4 = arith.constant 0 : index
    %c0_5 = arith.constant 0 : index
    %5 = vector.load %arg4[%c0_4, %c0_5] : memref<16x128xf32, #tpu.memory_space<vmem>>, vector<16x128xf32>
    %6 = arith.mulf %3, %5 : vector<16x128xf32>
    %7 = arith.mulf %4, %5 : vector<16x128xf32>
    %8 = arith.mulf %6, %6 : vector<16x128xf32>
    %9 = arith.mulf %7, %7 : vector<16x128xf32>
    %10 = arith.addf %8, %9 : vector<16x128xf32>
    %11 = math.sqrt %10 : vector<16x128xf32>
    %c1_i32 = arith.constant 1 : i32
    %12 = arith.muli %arg0, %c1_i32 : i32
    %13 = arith.addi %12, %arg1 : i32
    %c16_i32 = arith.constant 16 : i32
    %14 = arith.muli %13, %c16_i32 : i32
    %c16_i32_6 = arith.constant 16 : i32
    %15 = arith.subi %c16_i32_6, %14 : i32
    %16 = tpu.iota {dimensions = array<i32: 0>} : vector<16x128xi32>
    %17 = vector.broadcast %15 : i32 to vector<16x128xi32>
    %18 = arith.cmpi slt, %16, %17 : vector<16x128xi32>
    %cst = arith.constant 0.000000e+00 : f32
    %19 = vector.broadcast %cst : f32 to vector<16x128xf32>
    %20 = arith.select %18, %11, %19 : vector<16x128xi1>, vector<16x128xf32>
    %c0_7 = arith.constant 0 : index
    %c0_8 = arith.constant 0 : index
    %21 = vector.load %arg5[%c0_7, %c0_8] : memref<8x128xf32, #tpu.memory_space<vmem>>, vector<8x128xf32>
    %22 = vector.shape_cast %20 : vector<16x128xf32> to vector<2x8x128xf32>
    %cst_9 = arith.constant dense<0.000000e+00> : vector<8x128xf32>
    %23 = vector.multi_reduction <add>, %22, %cst_9 [0] : vector<2x8x128xf32> to vector<8x128xf32>
    %24 = arith.addf %21, %23 : vector<8x128xf32>
    %c0_10 = arith.constant 0 : index
    %c0_11 = arith.constant 0 : index
    %25 = vector.load %arg5[%c0_10, %c0_11] : memref<8x128xf32, #tpu.memory_space<vmem>>, vector<8x128xf32>
    tpu.vector_store %arg5[%c0_10, %c0_11], %24 {strides = array<i32>} : memref<8x128xf32, #tpu.memory_space<vmem>>, vector<8x128xf32>,
    return
  }
  func.func @transform_0(%arg0: i32, %arg1: i32) -> (i32, i32) {
    %c1_i32 = arith.constant 1 : i32
    %0 = arith.muli %arg0, %c1_i32 : i32
    %1 = arith.addi %0, %arg1 : i32
    %c0_i32 = arith.constant 0 : i32
    %2 = arith.minsi %1, %c0_i32 : i32
    %c0_i32_0 = arith.constant 0 : i32
    %c0_i32_1 = arith.constant 0 : i32
    return %2, %c0_i32_0 : i32, i32
  }
  func.func @transform_1(%arg0: i32, %arg1: i32) -> (i32, i32) {
    %c1_i32 = arith.constant 1 : i32
    %0 = arith.muli %arg0, %c1_i32 : i32
    %1 = arith.addi %0, %arg1 : i32
    %c0_i32 = arith.constant 0 : i32
    %2 = arith.minsi %1, %c0_i32 : i32
    %c0_i32_0 = arith.constant 0 : i32
    %c0_i32_1 = arith.constant 0 : i32
    return %2, %c0_i32_0 : i32, i32
  }
  func.func @transform_2(%arg0: i32, %arg1: i32) -> (i32, i32) {
    %c1_i32 = arith.constant 1 : i32
    %0 = arith.muli %arg0, %c1_i32 : i32
    %1 = arith.addi %0, %arg1 : i32
    %c0_i32 = arith.constant 0 : i32
    %2 = arith.minsi %1, %c0_i32 : i32
    %c0_i32_0 = arith.constant 0 : i32
    %c0_i32_1 = arith.constant 0 : i32
    return %2, %c0_i32_0 : i32, i32
  }
  func.func @transform_3(%arg0: i32, %arg1: i32) -> (i32, i32) {
    %c0_i32 = arith.constant 0 : i32
    %c0_i32_0 = arith.constant 0 : i32
    return %arg0, %c0_i32 : i32, i32
  }
}

</mosaic_0001>

<llo_original>
// kernel: tpu_custom_call.1
$region0: #{tpu_custom_call.1}
  #allocation0 [shape = 'u32[]', space=smem, size = 0x4, offset = 0x4, fixed_abs, tag = 'smem constant byte address 0x4 - core index']
  #allocation1 [shape = 'u32[72,128]{1,0:T(1,128)}', space=vmem, size = 0x9000, scoped, tag = 'internal scratch']
  %s0 = inlined_call_operand.hbm [shape: f32[16,128], index: 0, kind: input, shape index: {}]
  %s1 = inlined_call_operand.hbm [shape: f32[16,128], index: 1, kind: input, shape index: {}]
  %s2 = inlined_call_operand.hbm [shape: f32[16,128], index: 2, kind: input, shape index: {}]
  %s3 = inlined_call_operand.hbm [shape: f32[8,128], index: 3, kind: output, shape index: {}]
  %s4 = sld [smem:[#allocation0]]
  $region38: #{tpu_custom_call.1} parent=0
    _
  %s6 = ssub.s32 1, %s4
  %s7 = scalar_select 0, %s6, %s4
  $region1: #{tpu_custom_call.1} parent=0
    #allocation2 [shape = 'u8[8192]{0}', space=vmem, size = 0x2000, scoped, tag = 'input window, operand 0, single buffered']
    #allocation3 [shape = 's32[1]{0}', space=sflag, size = 0x4, scoped, tag = 'scoped memory for tpu_custom_call.1']
    #allocation4 [shape = 's32[1]{0}', space=sflag, size = 0x4, scoped, tag = 'scoped memory for tpu_custom_call.1']
    #allocation5 [shape = 'u8[8192]{0}', space=vmem, size = 0x2000, scoped, tag = 'input window, operand 1, single buffered']
    #allocation6 [shape = 's32[1]{0}', space=sflag, size = 0x4, scoped, tag = 'scoped memory for tpu_custom_call.1']
    #allocation7 [shape = 'u8[8192]{0}', space=vmem, size = 0x2000, scoped, tag = 'input window, operand 2, single buffered']
    #allocation8 [shape = 'u8[4096]{0}', space=vmem, size = 0x1000, scoped, tag = 'output window, operand 0, single buffered']
    %8 = vsyncpa [#allocation3], 0
    %9 = vsyncpa [#allocation6], 0
    %10 = vsyncpa [#allocation4], 0
    // Predicated region
    $region2: #{tpu_custom_call.1} parent=1 // pred_check
      _
    $region3: #{tpu_custom_call.1} parent=1 // pred_check_branch
      %12 = sbr.rel (0) target = $region5
    $region4: #{tpu_custom_call.1} parent=1 // pred_region
      %s13 = sadd.s32 0, 0
      %p14 = scmp.lt.s32.totalorder %s13, 0
      %s15 = scalar_select %p14, %s13, 0
      %s16 = smul.u32 2, %s15
      %18 = vsyncadd [#allocation3], 0
      %s19 = smul.addr %s16, 8
      %s20 = scalar_lea.hbm %s0, %s19
      %s21 = sshll.u32 %s20, 4
      %s22 = int_to_ptr.hbm [resolvable:$true] %s21
      %s23 = sshll.u32 [#allocation2], 4
      %s24 = int_to_ptr.vmem [resolvable:$true] %s23
      %29 = dma.hbm_to_vmem [thread:$0]  %s22, 256, %s24, [#allocation3], 128, 128, 8
    $region5: #{tpu_custom_call.1} parent=1 // pred_fallthru
      _
    // Predicated region
    $region6: #{tpu_custom_call.1} parent=1 // pred_check
      _
    $region7: #{tpu_custom_call.1} parent=1 // pred_check_branch
      %31 = sbr.rel (0) target = $region9
    $region8: #{tpu_custom_call.1} parent=1 // pred_region
      %s32 = sadd.s32 0, 0
      %p33 = scmp.lt.s32.totalorder %s32, 0
      %s34 = scalar_select %p33, %s32, 0
      %s35 = smul.u32 2, %s34
      %37 = vsyncadd [#allocation6], 0
      %s38 = smul.addr %s35, 8
      %s39 = scalar_lea.hbm %s1, %s38
      %s40 = sshll.u32 %s39, 4
      %s41 = int_to_ptr.hbm [resolvable:$true] %s40
      %s42 = sshll.u32 [#allocation5], 4
      %s43 = int_to_ptr.vmem [resolvable:$true] %s42
      %48 = dma.hbm_to_vmem [thread:$0]  %s41, 256, %s43, [#allocation6], 128, 128, 8
    $region9: #{tpu_custom_call.1} parent=1 // pred_fallthru
      _
    // Predicated region
    $region10: #{tpu_custom_call.1} parent=1 // pred_check
      _
    $region11: #{tpu_custom_call.1} parent=1 // pred_check_branch
      %50 = sbr.rel (0) target = $region13
    $region12: #{tpu_custom_call.1} parent=1 // pred_region
      %s51 = sadd.s32 0, 0
      %p52 = scmp.lt.s32.totalorder %s51, 0
      %s53 = scalar_select %p52, %s51, 0
      %s54 = smul.u32 2, %s53
      %56 = vsyncadd [#allocation6], 0
      %s57 = smul.addr %s54, 8
      %s58 = scalar_lea.hbm %s2, %s57
      %s59 = sshll.u32 %s58, 4
      %s60 = int_to_ptr.hbm [resolvable:$true] %s59
      %s61 = sshll.u32 [#allocation7], 4
      %s62 = int_to_ptr.vmem [resolvable:$true] %s61
      %67 = dma.hbm_to_vmem [thread:$0]  %s60, 256, %s62, [#allocation6], 128, 128, 8
    $region13: #{tpu_custom_call.1} parent=1 // pred_fallthru
      _
    // Predicated region
    $region14: #{tpu_custom_call.1} parent=1 // pred_check
      _
    $region15: #{tpu_custom_call.1} parent=1 // pred_check_branch
      %69 = sbr.rel (0) target = $region17
    $region16: #{tpu_custom_call.1} parent=1 // pred_region
      %71 = dma.done [#allocation3], 256
    $region17: #{tpu_custom_call.1} parent=1 // pred_fallthru
      _
    // Predicated region
    $region18: #{tpu_custom_call.1} parent=1 // pred_check
      _
    $region19: #{tpu_custom_call.1} parent=1 // pred_check_branch
      %73 = sbr.rel (0) target = $region21
    $region20: #{tpu_custom_call.1} parent=1 // pred_region
      %75 = dma.done [#allocation6], 256
    $region21: #{tpu_custom_call.1} parent=1 // pred_fallthru
      _
    // Predicated region
    $region22: #{tpu_custom_call.1} parent=1 // pred_check
      _
    $region23: #{tpu_custom_call.1} parent=1 // pred_check_branch
      %77 = sbr.rel (0) target = $region25
    $region24: #{tpu_custom_call.1} parent=1 // pred_region
      %79 = dma.done [#allocation6], 256
    $region25: #{tpu_custom_call.1} parent=1 // pred_fallthru
      _
    %s80 = sadd.s32 0, 0
    %p81 = scmp.lt.s32.totalorder %s80, 0
    %s82 = scalar_select %p81, %s80, 0
    %s83 = smul.u32 2, %s82
    %s84 = sadd.s32 0, 0
    %p85 = scmp.lt.s32.totalorder %s84, 0
    %s86 = scalar_select %p85, %s84, 0
    %s87 = smul.u32 2, %s86
    %s88 = sadd.s32 0, 0
    %p89 = scmp.lt.s32.totalorder %s88, 0
    %s90 = scalar_select %p89, %s88, 0
    %s91 = smul.u32 2, %s90
    %p92 = scmp.eq.s32.totalorder 0, 0
    // Predicated region
    $region26: #{tpu_custom_call.1} parent=1 // pred_check
      %p93 = pneg %p92
    $region27: #{tpu_custom_call.1} parent=1 // pred_check_branch
      %95 = sbr.rel (%p93) target = $region29
    $region28: #{tpu_custom_call.1} parent=1 // pred_region
      %96 = vst [vmem:[#allocation8] sm:$0xff] 0.0
    $region29: #{tpu_custom_call.1} parent=1 // pred_fallthru
      _
    %v97 = vld [vmem:[#allocation2] sm:$0xff]
    %v98 = vld [vmem:[#allocation2 + $0x8] sm:$0xff]
    %v99 = vld [vmem:[#allocation5] sm:$0xff]
    %v100 = vld [vmem:[#allocation5 + $0x8] sm:$0xff]
    %v101 = vld [vmem:[#allocation7] sm:$0xff]
    %v102 = vld [vmem:[#allocation7 + $0x8] sm:$0xff]
    %v103 = vmul.f32 %v97, %v101
    %v104 = vmul.f32 %v98, %v102
    %v105 = vmul.f32 %v99, %v101
    %v106 = vmul.f32 %v100, %v102
    %v107 = vmul.f32 %v103, %v103
    %v108 = vmul.f32 %v104, %v104
    %v109 = vmul.f32 %v105, %v105
    %v110 = vmul.f32 %v106, %v106
    %v111 = vadd.f32 %v107, %v109
    %v112 = vadd.f32 %v108, %v110
    %v113 = vrsqrt.pop %v111
    %v114 = vmul.f32 %v113, %v111
    %v115 = vmul.f32 %v114, %v113
    %v116 = vmul.f32 0.5, %v115
    %v117 = vsub.f32 1.5, %v116
    %v118 = vmul.f32 %v113, %v117
    %v119 = vmul.f32 %v111, %v118
    %vm120 = vcmp.eq.f32.partialorder %v111, inf
    %v121 = vsel %vm120, %v111, %v119
    %vm122 = vcmp.eq.f32.partialorder %v111, 0.0
    %v123 = vand.u32 %v111, 2147483648
    %v124 = vsel %vm122, %v123, %v121
    %v125 = vrsqrt.pop %v112
    %v126 = vmul.f32 %v125, %v112
    %v127 = vmul.f32 %v126, %v125
    %v128 = vmul.f32 0.5, %v127
    %v129 = vsub.f32 1.5, %v128
    %v130 = vmul.f32 %v125, %v129
    %v131 = vmul.f32 %v112, %v130
    %vm132 = vcmp.eq.f32.partialorder %v112, inf
    %v133 = vsel %vm132, %v112, %v131
    %vm134 = vcmp.eq.f32.partialorder %v112, 0.0
    %v135 = vand.u32 %v112, 2147483648
    %v136 = vsel %vm134, %v135, %v133
    %s137 = sadd.s32 0, 0
    %s138 = smul.u32 %s137, 16
    %s139 = ssub.s32 16, %s138
    %v140 = vlaneseq
    %v141 = vshrl.u32 %v140, 7
    %v142 = vadd.s32 %v141, 8
    %v143 = vstv %s139
    %vm144 = vcmp.lt.s32.totalorder %v141, %v143
    %vm145 = vcmp.lt.s32.totalorder %v142, %v143
    %v146 = vsel %vm144, %v124, 0.0
    %v147 = vsel %vm145, %v136, 0.0
    %v148 = vld [vmem:[#allocation8] sm:$0xff]
    %v149 = vadd.f32 %v146, %v147
    %v150 = vadd.f32 %v148, %v149
    %151 = vst [vmem:[#allocation8] sm:$0xff] %v150
    // Predicated region
    $region30: #{tpu_custom_call.1} parent=1 // pred_check
      _
    $region31: #{tpu_custom_call.1} parent=1 // pred_check_branch
      %153 = sbr.rel (0) target = $region33
    $region32: #{tpu_custom_call.1} parent=1 // pred_region
      %155 = vsyncadd [#allocation4], 0
      %s157 = sshll.u32 [#allocation8], 4
      %s158 = int_to_ptr.vmem [resolvable:$true] %s157
      %s159 = sshll.u32 %s3, 4
      %s160 = int_to_ptr.hbm [resolvable:$true] %s159
      %162 = dma.vmem_to_hbm [thread:$0]  %s158, 128, %s160, [#allocation4]
    $region33: #{tpu_custom_call.1} parent=1 // pred_fallthru
      _
    // Predicated region
    $region34: #{tpu_custom_call.1} parent=1 // pred_check
      _
    $region35: #{tpu_custom_call.1} parent=1 // pred_check_branch
      %164 = sbr.rel (0) target = $region37
    $region36: #{tpu_custom_call.1} parent=1 // pred_region
      %166 = dma.done [#allocation4], 128
    $region37: #{tpu_custom_call.1} parent=1 // pred_fallthru
      _
    %167 = vsyncpa [#allocation3], 1
    %168 = vsyncpa [#allocation6], 1
    %169 = vsyncpa [#allocation4], 1

</llo_original>
